<compile_context>
chip_gen: v7x
topology: tpu7x:2x2x1
jax: 0.10.0
libtpu: 0.0.40
codegen_flags: <defaults>
</compile_context>

<pallas_src>
import functools

import numpy as np
import jax
import jax.numpy as jnp
from jax.experimental import pallas as pl
from jax.experimental.pallas import tpu as pltpu


def _round_up(x, m):
    return ((x + m - 1) // m) * m


# -----------------------------------------------------------------------------
# One-time (init-time) parameter re-layout.  Do NOT call per forward.
#   emb_weight [n_obj, n_kp*out_dim*2]  ->  mean [n_obj, D], log_var [n_obj, D]
# -----------------------------------------------------------------------------
def prepare_variational_embedding(emb_weight, *, n_kp, out_dim):
    n_obj = emb_weight.shape[0]
    D = n_kp * out_dim
    assert emb_weight.shape[1] == 2 * D
    w = emb_weight.reshape(n_obj, n_kp, 2, out_dim)
    mean_plane = w[:, :, 0, :].reshape(n_obj, D)
    log_var_plane = w[:, :, 1, :].reshape(n_obj, D)
    return mean_plane, log_var_plane


# -----------------------------------------------------------------------------
# Primary path: whole planar table pinned in VMEM, bt rows gathered per step.
# -----------------------------------------------------------------------------
def _sample_pinned_kernel(idx_ref, mean_tab, lv_tab, eps_ref, out_ref, lv_s, *, bt):
    """Train: out = mean + exp(0.5*log_var) * eps on a full (bt, D) tile.

    idx_ref : SMEM [B_pad]          scalar-prefetched indices
    mean_tab: VMEM [n_obj, D]       pinned mean plane
    lv_tab  : VMEM [n_obj, D]       pinned log_var plane
    eps_ref : VMEM [bt, D]          pre-drawn N(0,1) noise for this row block
    out_ref : VMEM [bt, D]
    lv_s    : VMEM [bt, D] f32      scratch for gathered log_var rows
    """
    b0 = pl.program_id(0) * bt
    for i in range(bt):                       # static unroll; bt is small
        r = idx_ref[b0 + i]                   # dynamic scalar from SMEM
        out_ref[pl.ds(i, 1), :] = mean_tab[pl.ds(r, 1), :]
        lv_s[pl.ds(i, 1), :] = lv_tab[pl.ds(r, 1), :].astype(jnp.float32)
    std = jnp.exp(0.5 * lv_s[...])            # EUP, full (bt, D) tile
    out_ref[...] = (out_ref[...] + std * eps_ref[...]).astype(out_ref.dtype)


def _mean_pinned_kernel(idx_ref, mean_tab, out_ref, *, bt):
    """Eval: out = mean.  Only the mean plane is touched."""
    b0 = pl.program_id(0) * bt
    for i in range(bt):
        r = idx_ref[b0 + i]
        out_ref[pl.ds(i, 1), :] = mean_tab[pl.ds(r, 1), :]


# -----------------------------------------------------------------------------
# Fallback path (table too big to pin): data-dependent BlockSpec row gather.
# -----------------------------------------------------------------------------
def _sample_gather_kernel(idx_ref, mean_row, lv_row, eps_ref, out_ref):
    std = jnp.exp(0.5 * lv_row[...].astype(jnp.float32))
    out_ref[...] = (mean_row[...] + std * eps_ref[...]).astype(out_ref.dtype)


def _mean_gather_kernel(idx_ref, mean_row, out_ref):
    out_ref[...] = mean_row[...].astype(out_ref.dtype)


# -----------------------------------------------------------------------------
# Forward
# -----------------------------------------------------------------------------
def variational_embedding_forward(mean_plane, log_var_plane, idx, *, n_kp, out_dim,
                                  sample_embedding=True, rng_key=None,
                                  block_b=32, pin_table_in_vmem=None,
                                  max_pinned_table_bytes=8 * 1024 * 1024):
    """JAX/Pallas equivalent of VariationalEmbedding.forward.

    mean_plane, log_var_plane : [n_obj, D] planar tables from
                                prepare_variational_embedding (init-time).
    idx                       : [B] integer
    returns                   : [B, n_kp, out_dim]
    """
    n_obj, D = mean_plane.shape
    assert D == n_kp * out_dim
    assert log_var_plane.shape == (n_obj, D)

    B = idx.shape[0]
    idx = idx.astype(jnp.int32)
    dtype = mean_plane.dtype
    itemsize = jnp.dtype(dtype).itemsize

    if sample_embedding:
        if rng_key is None:
            raise ValueError("rng_key is required when sample_embedding=True "
                             "(fresh noise every call, like torch.randn_like).")
        eps = jax.random.normal(rng_key, (B, D), dtype=dtype)
    else:
        eps = None

    # Conservative budget so the default scoped-VMEM limit suffices on all
    # generations (raise vmem_limit_bytes + this budget for bigger tables).
    table_bytes = (2 if sample_embedding else 1) * n_obj * D * itemsize
    if pin_table_in_vmem is None:
        pin_table_in_vmem = table_bytes <= max_pinned_table_bytes

    cparams = pltpu.CompilerParams(dimension_semantics=("parallel",))
    vmem = pltpu.MemorySpace.VMEM

    if pin_table_in_vmem:
        bt = max(8, min(block_b, _round_up(B, 8)))
        B_pad = _round_up(B, bt)
        idx_p = jnp.pad(idx, (0, B_pad - B)) if B_pad != B else idx
        row_spec = pl.BlockSpec((bt, D), lambda b, idx_r: (b, 0))

        if sample_embedding:
            eps_p = jnp.pad(eps, ((0, B_pad - B), (0, 0))) if B_pad != B else eps
            out_flat = pl.pallas_call(
                functools.partial(_sample_pinned_kernel, bt=bt),
                out_shape=jax.ShapeDtypeStruct((B_pad, D), dtype),
                grid_spec=pltpu.PrefetchScalarGridSpec(
                    num_scalar_prefetch=1,           # idx lives in SMEM
                    grid=(B_pad // bt,),
                    in_specs=[
                        pl.BlockSpec(memory_space=vmem),   # mean table, pinned
                        pl.BlockSpec(memory_space=vmem),   # log_var table, pinned
                        row_spec,                          # eps  [bt, D]
                    ],
                    out_specs=row_spec,
                    scratch_shapes=[pltpu.VMEM((bt, D), jnp.float32)],
                ),
                compiler_params=cparams,
            )(idx_p, mean_plane, log_var_plane, eps_p)
        else:
            out_flat = pl.pallas_call(
                functools.partial(_mean_pinned_kernel, bt=bt),
                out_shape=jax.ShapeDtypeStruct((B_pad, D), dtype),
                grid_spec=pltpu.PrefetchScalarGridSpec(
                    num_scalar_prefetch=1,
                    grid=(B_pad // bt,),
                    in_specs=[pl.BlockSpec(memory_space=vmem)],  # mean only
                    out_specs=row_spec,
                ),
                compiler_params=cparams,
            )(idx_p, mean_plane)
        out_flat = out_flat[:B]
    else:
        # Large-table fallback: one data-dependent row gather per grid step.
        gather_spec = pl.BlockSpec((1, D), lambda b, idx_r: (idx_r[b], 0))
        row_spec = pl.BlockSpec((1, D), lambda b, idx_r: (b, 0))
        if sample_embedding:
            out_flat = pl.pallas_call(
                _sample_gather_kernel,
                out_shape=jax.ShapeDtypeStruct((B, D), dtype),
                grid_spec=pltpu.PrefetchScalarGridSpec(
                    num_scalar_prefetch=1, grid=(B,),
                    in_specs=[gather_spec, gather_spec, row_spec],
                    out_specs=row_spec,
                ),
                compiler_params=cparams,
            )(idx, mean_plane, log_var_plane, eps)
        else:
            out_flat = pl.pallas_call(
                _mean_gather_kernel,
                out_shape=jax.ShapeDtypeStruct((B, D), dtype),
                grid_spec=pltpu.PrefetchScalarGridSpec(
                    num_scalar_prefetch=1, grid=(B,),
                    in_specs=[gather_spec],
                    out_specs=row_spec,
                ),
                compiler_params=cparams,
            )(idx, mean_plane)

    # Free reshape back to the module's output contract.
    return out_flat.reshape(B, n_kp, out_dim)


if __name__ == "__main__":
    # Small shapes consistent with the module's forward contract.
    n_obj, n_kp, out_dim, B = 16, 8, 32, 4
    D = n_kp * out_dim

    key = jax.random.PRNGKey(0)
    kw, ki, ke = jax.random.split(key, 3)
    # NOTE: the PyTorch module zero-inits the table; use a deterministic
    # non-zero init so the exp / FMA paths are actually exercised.
    emb_weight = (0.1 * jax.random.normal(kw, (n_obj, 2 * D))).astype(jnp.float32)
    idx = jax.random.randint(ki, (B,), 0, n_obj, dtype=jnp.int32)

    # Init-time re-layout (hoisted out of forward).
    mean_plane, log_var_plane = prepare_variational_embedding(
        emb_weight, n_kp=n_kp, out_dim=out_dim)

    # Pure-JAX reference pieces.
    rows = emb_weight[idx].reshape(B, n_kp, 2 * out_dim)
    mean_ref = rows[:, :, :out_dim]
    log_var_ref = rows[:, :, out_dim:]
    std_ref = jnp.exp(0.5 * log_var_ref)
    eps_ref = jax.random.normal(ke, (B, D), dtype=jnp.float32).reshape(B, n_kp, out_dim)
    train_ref = mean_ref + std_ref * eps_ref

    # Exercise both the pinned-table (primary) and HBM-gather (fallback) paths.
    for pin in (True, False):
        # --- Training path: mean + std * eps --------------------------------
        out_train = variational_embedding_forward(
            mean_plane, log_var_plane, idx, n_kp=n_kp, out_dim=out_dim,
            sample_embedding=True, rng_key=ke, pin_table_in_vmem=pin)
        out_train = jax.block_until_ready(out_train)
        assert out_train.shape == (B, n_kp, out_dim)
        assert bool(jnp.all(jnp.isfinite(out_train)))
        np.testing.assert_allclose(np.asarray(out_train), np.asarray(train_ref),
                                   rtol=1e-5, atol=1e-5)

        # --- Eval path: exactly the mean -------------------------------------
        out_eval = variational_embedding_forward(
            mean_plane, log_var_plane, idx, n_kp=n_kp, out_dim=out_dim,
            sample_embedding=False, pin_table_in_vmem=pin)
        out_eval = jax.block_until_ready(out_eval)
        np.testing.assert_allclose(np.asarray(out_eval), np.asarray(mean_ref),
                                   rtol=0, atol=0)

        # Sanity: sampled output differs from the pure mean.
        assert float(jnp.max(jnp.abs(out_train - mean_ref))) > 1e-4

    print("KERNEL_OK")
</pallas_src>

<mosaic_0001>
module attributes {stable_mosaic.version = 11 : i64} {
  func.func @_sample_pinned_kernel(%arg0: i32, %arg1: memref<8xi32, #tpu.memory_space<smem>>, %arg2: memref<16x256xf32, #tpu.memory_space<vmem>>, %arg3: memref<16x256xf32, #tpu.memory_space<vmem>>, %arg4: memref<8x256xf32, #tpu.memory_space<vmem>>, %arg5: memref<8x256xf32, #tpu.memory_space<vmem>>, %arg6: memref<8x256xf32, #tpu.memory_space<vmem>>) attributes {dimension_semantics = [#tpu.dimension_semantics<parallel>], iteration_bounds = array<i64: 1>, scalar_prefetch = 1 : i64, scratch_operands = 1 : i64, tpu.core_type = #tpu.core_type<tc>, window_params = [{pipeline_mode = #tpu.pipeline_mode<synchronous>, transform_indices = @transform_0, window_bounds = array<i64: 16, 256>}, {pipeline_mode = #tpu.pipeline_mode<synchronous>, transform_indices = @transform_1, window_bounds = array<i64: 16, 256>}, {transform_indices = @transform_2, window_bounds = array<i64: 8, 256>}, {transform_indices = @transform_3, window_bounds = array<i64: 8, 256>}]} {
    %c8_i32 = arith.constant 8 : i32
    %0 = arith.muli %arg0, %c8_i32 : i32
    %c0_i32 = arith.constant 0 : i32
    %1 = arith.addi %0, %c0_i32 : i32
    %2 = arith.index_cast %1 : i32 to index
    %3 = memref.load %arg1[%2] : memref<8xi32, #tpu.memory_space<smem>>
    %4 = arith.index_cast %3 : i32 to index
    %c0 = arith.constant 0 : index
    %5 = vector.load %arg2[%4, %c0] : memref<16x256xf32, #tpu.memory_space<vmem>>, vector<1x256xf32>
    %c0_0 = arith.constant 0 : index
    %c0_1 = arith.constant 0 : index
    %6 = vector.load %arg5[%c0_0, %c0_1] : memref<8x256xf32, #tpu.memory_space<vmem>>, vector<1x256xf32>
    tpu.vector_store %arg5[%c0_0, %c0_1], %5 {strides = array<i32>} : memref<8x256xf32, #tpu.memory_space<vmem>>, vector<1x256xf32>,
    %7 = arith.index_cast %3 : i32 to index
    %c0_2 = arith.constant 0 : index
    %8 = vector.load %arg3[%7, %c0_2] : memref<16x256xf32, #tpu.memory_space<vmem>>, vector<1x256xf32>
    %c0_3 = arith.constant 0 : index
    %c0_4 = arith.constant 0 : index
    %9 = vector.load %arg6[%c0_3, %c0_4] : memref<8x256xf32, #tpu.memory_space<vmem>>, vector<1x256xf32>
    tpu.vector_store %arg6[%c0_3, %c0_4], %8 {strides = array<i32>} : memref<8x256xf32, #tpu.memory_space<vmem>>, vector<1x256xf32>,
    %c1_i32 = arith.constant 1 : i32
    %10 = arith.addi %0, %c1_i32 : i32
    %11 = arith.index_cast %10 : i32 to index
    %12 = memref.load %arg1[%11] : memref<8xi32, #tpu.memory_space<smem>>
    %13 = arith.index_cast %12 : i32 to index
    %c0_5 = arith.constant 0 : index
    %14 = vector.load %arg2[%13, %c0_5] : memref<16x256xf32, #tpu.memory_space<vmem>>, vector<1x256xf32>
    %c1 = arith.constant 1 : index
    %c0_6 = arith.constant 0 : index
    %15 = vector.load %arg5[%c1, %c0_6] : memref<8x256xf32, #tpu.memory_space<vmem>>, vector<1x256xf32>
    tpu.vector_store %arg5[%c1, %c0_6], %14 {strides = array<i32>} : memref<8x256xf32, #tpu.memory_space<vmem>>, vector<1x256xf32>,
    %16 = arith.index_cast %12 : i32 to index
    %c0_7 = arith.constant 0 : index
    %17 = vector.load %arg3[%16, %c0_7] : memref<16x256xf32, #tpu.memory_space<vmem>>, vector<1x256xf32>
    %c1_8 = arith.constant 1 : index
    %c0_9 = arith.constant 0 : index
    %18 = vector.load %arg6[%c1_8, %c0_9] : memref<8x256xf32, #tpu.memory_space<vmem>>, vector<1x256xf32>
    tpu.vector_store %arg6[%c1_8, %c0_9], %17 {strides = array<i32>} : memref<8x256xf32, #tpu.memory_space<vmem>>, vector<1x256xf32>,
    %c2_i32 = arith.constant 2 : i32
    %19 = arith.addi %0, %c2_i32 : i32
    %20 = arith.index_cast %19 : i32 to index
    %21 = memref.load %arg1[%20] : memref<8xi32, #tpu.memory_space<smem>>
    %22 = arith.index_cast %21 : i32 to index
    %c0_10 = arith.constant 0 : index
    %23 = vector.load %arg2[%22, %c0_10] : memref<16x256xf32, #tpu.memory_space<vmem>>, vector<1x256xf32>
    %c2 = arith.constant 2 : index
    %c0_11 = arith.constant 0 : index
    %24 = vector.load %arg5[%c2, %c0_11] : memref<8x256xf32, #tpu.memory_space<vmem>>, vector<1x256xf32>
    tpu.vector_store %arg5[%c2, %c0_11], %23 {strides = array<i32>} : memref<8x256xf32, #tpu.memory_space<vmem>>, vector<1x256xf32>,
    %25 = arith.index_cast %21 : i32 to index
    %c0_12 = arith.constant 0 : index
    %26 = vector.load %arg3[%25, %c0_12] : memref<16x256xf32, #tpu.memory_space<vmem>>, vector<1x256xf32>
    %c2_13 = arith.constant 2 : index
    %c0_14 = arith.constant 0 : index
    %27 = vector.load %arg6[%c2_13, %c0_14] : memref<8x256xf32, #tpu.memory_space<vmem>>, vector<1x256xf32>
    tpu.vector_store %arg6[%c2_13, %c0_14], %26 {strides = array<i32>} : memref<8x256xf32, #tpu.memory_space<vmem>>, vector<1x256xf32>,
    %c3_i32 = arith.constant 3 : i32
    %28 = arith.addi %0, %c3_i32 : i32
    %29 = arith.index_cast %28 : i32 to index
    %30 = memref.load %arg1[%29] : memref<8xi32, #tpu.memory_space<smem>>
    %31 = arith.index_cast %30 : i32 to index
    %c0_15 = arith.constant 0 : index
    %32 = vector.load %arg2[%31, %c0_15] : memref<16x256xf32, #tpu.memory_space<vmem>>, vector<1x256xf32>
    %c3 = arith.constant 3 : index
    %c0_16 = arith.constant 0 : index
    %33 = vector.load %arg5[%c3, %c0_16] : memref<8x256xf32, #tpu.memory_space<vmem>>, vector<1x256xf32>
    tpu.vector_store %arg5[%c3, %c0_16], %32 {strides = array<i32>} : memref<8x256xf32, #tpu.memory_space<vmem>>, vector<1x256xf32>,
    %34 = arith.index_cast %30 : i32 to index
    %c0_17 = arith.constant 0 : index
    %35 = vector.load %arg3[%34, %c0_17] : memref<16x256xf32, #tpu.memory_space<vmem>>, vector<1x256xf32>
    %c3_18 = arith.constant 3 : index
    %c0_19 = arith.constant 0 : index
    %36 = vector.load %arg6[%c3_18, %c0_19] : memref<8x256xf32, #tpu.memory_space<vmem>>, vector<1x256xf32>
    tpu.vector_store %arg6[%c3_18, %c0_19], %35 {strides = array<i32>} : memref<8x256xf32, #tpu.memory_space<vmem>>, vector<1x256xf32>,
    %c4_i32 = arith.constant 4 : i32
    %37 = arith.addi %0, %c4_i32 : i32
    %38 = arith.index_cast %37 : i32 to index
    %39 = memref.load %arg1[%38] : memref<8xi32, #tpu.memory_space<smem>>
    %40 = arith.index_cast %39 : i32 to index
    %c0_20 = arith.constant 0 : index
    %41 = vector.load %arg2[%40, %c0_20] : memref<16x256xf32, #tpu.memory_space<vmem>>, vector<1x256xf32>
    %c4 = arith.constant 4 : index
    %c0_21 = arith.constant 0 : index
    %42 = vector.load %arg5[%c4, %c0_21] : memref<8x256xf32, #tpu.memory_space<vmem>>, vector<1x256xf32>
    tpu.vector_store %arg5[%c4, %c0_21], %41 {strides = array<i32>} : memref<8x256xf32, #tpu.memory_space<vmem>>, vector<1x256xf32>,
    %43 = arith.index_cast %39 : i32 to index
    %c0_22 = arith.constant 0 : index
    %44 = vector.load %arg3[%43, %c0_22] : memref<16x256xf32, #tpu.memory_space<vmem>>, vector<1x256xf32>
    %c4_23 = arith.constant 4 : index
    %c0_24 = arith.constant 0 : index
    %45 = vector.load %arg6[%c4_23, %c0_24] : memref<8x256xf32, #tpu.memory_space<vmem>>, vector<1x256xf32>
    tpu.vector_store %arg6[%c4_23, %c0_24], %44 {strides = array<i32>} : memref<8x256xf32, #tpu.memory_space<vmem>>, vector<1x256xf32>,
    %c5_i32 = arith.constant 5 : i32
    %46 = arith.addi %0, %c5_i32 : i32
    %47 = arith.index_cast %46 : i32 to index
    %48 = memref.load %arg1[%47] : memref<8xi32, #tpu.memory_space<smem>>
    %49 = arith.index_cast %48 : i32 to index
    %c0_25 = arith.constant 0 : index
    %50 = vector.load %arg2[%49, %c0_25] : memref<16x256xf32, #tpu.memory_space<vmem>>, vector<1x256xf32>
    %c5 = arith.constant 5 : index
    %c0_26 = arith.constant 0 : index
    %51 = vector.load %arg5[%c5, %c0_26] : memref<8x256xf32, #tpu.memory_space<vmem>>, vector<1x256xf32>
    tpu.vector_store %arg5[%c5, %c0_26], %50 {strides = array<i32>} : memref<8x256xf32, #tpu.memory_space<vmem>>, vector<1x256xf32>,
    %52 = arith.index_cast %48 : i32 to index
    %c0_27 = arith.constant 0 : index
    %53 = vector.load %arg3[%52, %c0_27] : memref<16x256xf32, #tpu.memory_space<vmem>>, vector<1x256xf32>
    %c5_28 = arith.constant 5 : index
    %c0_29 = arith.constant 0 : index
    %54 = vector.load %arg6[%c5_28, %c0_29] : memref<8x256xf32, #tpu.memory_space<vmem>>, vector<1x256xf32>
    tpu.vector_store %arg6[%c5_28, %c0_29], %53 {strides = array<i32>} : memref<8x256xf32, #tpu.memory_space<vmem>>, vector<1x256xf32>,
    %c6_i32 = arith.constant 6 : i32
    %55 = arith.addi %0, %c6_i32 : i32
    %56 = arith.index_cast %55 : i32 to index
    %57 = memref.load %arg1[%56] : memref<8xi32, #tpu.memory_space<smem>>
    %58 = arith.index_cast %57 : i32 to index
    %c0_30 = arith.constant 0 : index
    %59 = vector.load %arg2[%58, %c0_30] : memref<16x256xf32, #tpu.memory_space<vmem>>, vector<1x256xf32>
    %c6 = arith.constant 6 : index
    %c0_31 = arith.constant 0 : index
    %60 = vector.load %arg5[%c6, %c0_31] : memref<8x256xf32, #tpu.memory_space<vmem>>, vector<1x256xf32>
    tpu.vector_store %arg5[%c6, %c0_31], %59 {strides = array<i32>} : memref<8x256xf32, #tpu.memory_space<vmem>>, vector<1x256xf32>,
    %61 = arith.index_cast %57 : i32 to index
    %c0_32 = arith.constant 0 : index
    %62 = vector.load %arg3[%61, %c0_32] : memref<16x256xf32, #tpu.memory_space<vmem>>, vector<1x256xf32>
    %c6_33 = arith.constant 6 : index
    %c0_34 = arith.constant 0 : index
    %63 = vector.load %arg6[%c6_33, %c0_34] : memref<8x256xf32, #tpu.memory_space<vmem>>, vector<1x256xf32>
    tpu.vector_store %arg6[%c6_33, %c0_34], %62 {strides = array<i32>} : memref<8x256xf32, #tpu.memory_space<vmem>>, vector<1x256xf32>,
    %c7_i32 = arith.constant 7 : i32
    %64 = arith.addi %0, %c7_i32 : i32
    %65 = arith.index_cast %64 : i32 to index
    %66 = memref.load %arg1[%65] : memref<8xi32, #tpu.memory_space<smem>>
    %67 = arith.index_cast %66 : i32 to index
    %c0_35 = arith.constant 0 : index
    %68 = vector.load %arg2[%67, %c0_35] : memref<16x256xf32, #tpu.memory_space<vmem>>, vector<1x256xf32>
    %c7 = arith.constant 7 : index
    %c0_36 = arith.constant 0 : index
    %69 = vector.load %arg5[%c7, %c0_36] : memref<8x256xf32, #tpu.memory_space<vmem>>, vector<1x256xf32>
    tpu.vector_store %arg5[%c7, %c0_36], %68 {strides = array<i32>} : memref<8x256xf32, #tpu.memory_space<vmem>>, vector<1x256xf32>,
    %70 = arith.index_cast %66 : i32 to index
    %c0_37 = arith.constant 0 : index
    %71 = vector.load %arg3[%70, %c0_37] : memref<16x256xf32, #tpu.memory_space<vmem>>, vector<1x256xf32>
    %c7_38 = arith.constant 7 : index
    %c0_39 = arith.constant 0 : index
    %72 = vector.load %arg6[%c7_38, %c0_39] : memref<8x256xf32, #tpu.memory_space<vmem>>, vector<1x256xf32>
    tpu.vector_store %arg6[%c7_38, %c0_39], %71 {strides = array<i32>} : memref<8x256xf32, #tpu.memory_space<vmem>>, vector<1x256xf32>,
    %c0_40 = arith.constant 0 : index
    %c0_41 = arith.constant 0 : index
    %73 = vector.load %arg6[%c0_40, %c0_41] : memref<8x256xf32, #tpu.memory_space<vmem>>, vector<8x256xf32>
    %cst = arith.constant 5.000000e-01 : f32
    %74 = vector.broadcast %cst : f32 to vector<8x256xf32>
    %75 = arith.mulf %74, %73 : vector<8x256xf32>
    %76 = math.exp %75 : vector<8x256xf32>
    %c0_42 = arith.constant 0 : index
    %c0_43 = arith.constant 0 : index
    %77 = vector.load %arg5[%c0_42, %c0_43] : memref<8x256xf32, #tpu.memory_space<vmem>>, vector<8x256xf32>
    %c0_44 = arith.constant 0 : index
    %c0_45 = arith.constant 0 : index
    %78 = vector.load %arg4[%c0_44, %c0_45] : memref<8x256xf32, #tpu.memory_space<vmem>>, vector<8x256xf32>
    %79 = arith.mulf %76, %78 : vector<8x256xf32>
    %80 = arith.addf %77, %79 : vector<8x256xf32>
    %c0_46 = arith.constant 0 : index
    %c0_47 = arith.constant 0 : index
    %81 = vector.load %arg5[%c0_46, %c0_47] : memref<8x256xf32, #tpu.memory_space<vmem>>, vector<8x256xf32>
    tpu.vector_store %arg5[%c0_46, %c0_47], %80 {strides = array<i32>} : memref<8x256xf32, #tpu.memory_space<vmem>>, vector<8x256xf32>,
    return
  }
  func.func @transform_0(%arg0: i32, %arg1: memref<8xi32, #tpu.memory_space<smem>>) -> (i32, i32) {
    %c0_i32 = arith.constant 0 : i32
    %c0_i32_0 = arith.constant 0 : i32
    %c0_i32_1 = arith.constant 0 : i32
    return %c0_i32, %c0_i32_0 : i32, i32
  }
  func.func @transform_1(%arg0: i32, %arg1: memref<8xi32, #tpu.memory_space<smem>>) -> (i32, i32) {
    %c0_i32 = arith.constant 0 : i32
    %c0_i32_0 = arith.constant 0 : i32
    %c0_i32_1 = arith.constant 0 : i32
    return %c0_i32, %c0_i32_0 : i32, i32
  }
  func.func @transform_2(%arg0: i32, %arg1: memref<8xi32, #tpu.memory_space<smem>>) -> (i32, i32) {
    %c0_i32 = arith.constant 0 : i32
    %c0_i32_0 = arith.constant 0 : i32
    return %arg0, %c0_i32 : i32, i32
  }
  func.func @transform_3(%arg0: i32, %arg1: memref<8xi32, #tpu.memory_space<smem>>) -> (i32, i32) {
    %c0_i32 = arith.constant 0 : i32
    %c0_i32_0 = arith.constant 0 : i32
    return %arg0, %c0_i32 : i32, i32
  }
}

</mosaic_0001>

<llo_original>
// kernel: tpu_custom_call.1
$region0: #{tpu_custom_call.1}
  #allocation0 [shape = 'u32[]', space=smem, size = 0x4, offset = 0x4, fixed_abs, tag = 'smem constant byte address 0x4 - core index']
  #allocation1 [shape = 'u32[144,128]{1,0:T(1,128)}', space=vmem, size = 0x12000, scoped, tag = 'internal scratch']
  #allocation2 [shape = 'f32[8,256]{1,0:T(8,128)}', space=vmem, size = 0x2000, scoped, tag = 'scratch operand']
  #allocation3 [shape = 's32[1]{0}', space=sflag, size = 0x4, scoped, tag = 'scoped memory for tpu_custom_call.1']
  #allocation4 [shape = 'u8[512]{0}', space=smem, size = 0x200, scoped, tag = 'prefetched SMEM operand 0']
  %s0 = inlined_call_operand.hbm [shape: s32[8], index: 0, kind: input, shape index: {}]
  %s1 = inlined_call_operand.hbm [shape: f32[16,256], index: 1, kind: input, shape index: {}]
  %s2 = inlined_call_operand.hbm [shape: f32[16,256], index: 2, kind: input, shape index: {}]
  %s3 = inlined_call_operand.hbm [shape: f32[8,256], index: 3, kind: input, shape index: {}]
  %s4 = inlined_call_operand.hbm [shape: f32[8,256], index: 4, kind: output, shape index: {}]
  %s5 = sld [smem:[#allocation0]]
  $region34: #{tpu_custom_call.1} parent=0
    _
  %s7 = ssub.s32 1, %s5
  %s8 = scalar_select 0, %s7, %s5
  %10 = dma.hbm_to_smem %s0, 16, [#allocation4], [#allocation3]
  %11 = dma.done [#allocation3], 16
  %12 = sfence
  $region1: #{tpu_custom_call.1} parent=0
    #allocation5 [shape = 'u8[16384]{0}', space=vmem, size = 0x4000, scoped, tag = 'input window, operand 1, single buffered']
    #allocation6 [shape = 's32[1]{0}', space=sflag, size = 0x4, scoped, tag = 'scoped memory for tpu_custom_call.1']
    #allocation7 [shape = 's32[1]{0}', space=sflag, size = 0x4, scoped, tag = 'scoped memory for tpu_custom_call.1']
    #allocation8 [shape = 'u8[16384]{0}', space=vmem, size = 0x4000, scoped, tag = 'input window, operand 2, single buffered']
    #allocation9 [shape = 's32[1]{0}', space=sflag, size = 0x4, scoped, tag = 'scoped memory for tpu_custom_call.1']
    #allocation10 [shape = 'u8[8192]{0}', space=vmem, size = 0x2000, scoped, tag = 'input window, operand 3, single buffered']
    #allocation11 [shape = 'u8[8192]{0}', space=vmem, size = 0x2000, scoped, tag = 'output window, operand 0, single buffered']
    %13 = vsyncpa [#allocation6], 0
    %14 = vsyncpa [#allocation9], 0
    %15 = vsyncpa [#allocation7], 0
    // Predicated region
    $region2: #{tpu_custom_call.1} parent=1 // pred_check
      _
    $region3: #{tpu_custom_call.1} parent=1 // pred_check_branch
      %17 = sbr.rel (0) target = $region5
    $region4: #{tpu_custom_call.1} parent=1 // pred_region
      %s19 = ssub.s32 512, 512
      %20 = vsyncadd [#allocation6], %s19
      %s21 = sshll.u32 [#allocation5], 4
      %s22 = int_to_ptr.vmem [resolvable:$true] %s21
      %27 = dma.hbm_to_vmem [thread:$0]  %s1, 512, %s22, [#allocation6], 256, 256, 16
    $region5: #{tpu_custom_call.1} parent=1 // pred_fallthru
      _
    // Predicated region
    $region6: #{tpu_custom_call.1} parent=1 // pred_check
      _
    $region7: #{tpu_custom_call.1} parent=1 // pred_check_branch
      %29 = sbr.rel (0) target = $region9
    $region8: #{tpu_custom_call.1} parent=1 // pred_region
      %s31 = ssub.s32 512, 512
      %32 = vsyncadd [#allocation9], %s31
      %s33 = sshll.u32 [#allocation8], 4
      %s34 = int_to_ptr.vmem [resolvable:$true] %s33
      %39 = dma.hbm_to_vmem [thread:$0]  %s2, 512, %s34, [#allocation9], 256, 256, 16
    $region9: #{tpu_custom_call.1} parent=1 // pred_fallthru
      _
    // Predicated region
    $region10: #{tpu_custom_call.1} parent=1 // pred_check
      _
    $region11: #{tpu_custom_call.1} parent=1 // pred_check_branch
      %41 = sbr.rel (0) target = $region13
    $region12: #{tpu_custom_call.1} parent=1 // pred_region
      %s43 = ssub.s32 256, 256
      %44 = vsyncadd [#allocation9], %s43
      %s46 = sshll.u32 [#allocation10], 4
      %s47 = int_to_ptr.vmem [resolvable:$true] %s46
      %49 = dma.hbm_to_vmem [thread:$0]  %s3, 256, %s47, [#allocation9]
    $region13: #{tpu_custom_call.1} parent=1 // pred_fallthru
      _
    // Predicated region
    $region14: #{tpu_custom_call.1} parent=1 // pred_check
      _
    $region15: #{tpu_custom_call.1} parent=1 // pred_check_branch
      %51 = sbr.rel (0) target = $region17
    $region16: #{tpu_custom_call.1} parent=1 // pred_region
      %52 = dma.done [#allocation6], 512
    $region17: #{tpu_custom_call.1} parent=1 // pred_fallthru
      _
    // Predicated region
    $region18: #{tpu_custom_call.1} parent=1 // pred_check
      _
    $region19: #{tpu_custom_call.1} parent=1 // pred_check_branch
      %54 = sbr.rel (0) target = $region21
    $region20: #{tpu_custom_call.1} parent=1 // pred_region
      %55 = dma.done [#allocation9], 512
    $region21: #{tpu_custom_call.1} parent=1 // pred_fallthru
      _
    // Predicated region
    $region22: #{tpu_custom_call.1} parent=1 // pred_check
      _
    $region23: #{tpu_custom_call.1} parent=1 // pred_check_branch
      %57 = sbr.rel (0) target = $region25
    $region24: #{tpu_custom_call.1} parent=1 // pred_region
      %58 = dma.done [#allocation9], 256
    $region25: #{tpu_custom_call.1} parent=1 // pred_fallthru
      _
    %s59 = smul.u32 0, 8
    %s60 = sld [smem:[#allocation4 + %s59]]
    %s61 = sshra.s32 %s60, 3
    %s62 = sand.u32 %s60, 7
    %s63 = sshra.s32 %s60, 3
    %s64 = sand.u32 %s60, 7
    %s65 = smul.u32 %s61, 2
    %s66 = smul.u32 %s65, 8
    %s67 = sadd.s32 %s66, %s64
    %s68 = scalar_lea.vmem [#allocation5], %s67
    %v69 = vld [vmem:[%s68] ss:$8 sm:$0x3]
    %v70 = vlaneseq
    %vm71 = vcmp.ge.s32.totalorder %v70, 0
    %vm72 = vcmp.lt.s32.totalorder %v70, 256
    %vm73 = vmand %vm71, %vm72
    %74 = vst.msk [vmem:[#allocation11] ss:$8 sm:$0x3] %vm73, %v69
    %75 = vst.msk [vmem:[#allocation11] ss:$8 sm:$0x0] %vm73, %v69
    %s76 = scalar_lea.vmem [#allocation8], %s67
    %v77 = vld [vmem:[%s76] ss:$8 sm:$0x3]
    %78 = vst.msk [vmem:[#allocation2] ss:$8 sm:$0x3] %vm73, %v77
    %79 = vst.msk [vmem:[#allocation2] ss:$8 sm:$0x0] %vm73, %v77
    %s80 = sadd.s32 %s59, 1
    %s81 = sld [smem:[#allocation4 + %s80]]
    %s82 = sshra.s32 %s81, 3
    %s83 = sand.u32 %s81, 7
    %s84 = sshra.s32 %s81, 3
    %s85 = sand.u32 %s81, 7
    %s86 = smul.u32 %s82, 2
    %s87 = smul.u32 %s86, 8
    %s88 = sadd.s32 %s87, %s85
    %s89 = scalar_lea.vmem [#allocation5], %s88
    %v90 = vld [vmem:[%s89] ss:$8 sm:$0x3]
    %s91 = scalar_lea.vmem [#allocation11], 1
    %92 = vst.msk [vmem:[%s91] ss:$8 sm:$0x3] %vm73, %v90
    %93 = vst.msk [vmem:[%s91] ss:$8 sm:$0x0] %vm73, %v90
    %s94 = scalar_lea.vmem [#allocation8], %s88
    %v95 = vld [vmem:[%s94] ss:$8 sm:$0x3]
    %s96 = scalar_lea.vmem [#allocation2], 1
    %97 = vst.msk [vmem:[%s96] ss:$8 sm:$0x3] %vm73, %v95
    %98 = vst.msk [vmem:[%s96] ss:$8 sm:$0x0] %vm73, %v95
    %s99 = sadd.s32 %s59, 2
    %s100 = sld [smem:[#allocation4 + %s99]]
    %s101 = sshra.s32 %s100, 3
    %s102 = sand.u32 %s100, 7
    %s103 = sshra.s32 %s100, 3
    %s104 = sand.u32 %s100, 7
    %s105 = smul.u32 %s101, 2
    %s106 = smul.u32 %s105, 8
    %s107 = sadd.s32 %s106, %s104
    %s108 = scalar_lea.vmem [#allocation5], %s107
    %v109 = vld [vmem:[%s108] ss:$8 sm:$0x3]
    %s110 = scalar_lea.vmem [#allocation11], 2
    %111 = vst.msk [vmem:[%s110] ss:$8 sm:$0x3] %vm73, %v109
    %112 = vst.msk [vmem:[%s110] ss:$8 sm:$0x0] %vm73, %v109
    %s113 = scalar_lea.vmem [#allocation8], %s107
    %v114 = vld [vmem:[%s113] ss:$8 sm:$0x3]
    %s115 = scalar_lea.vmem [#allocation2], 2
    %116 = vst.msk [vmem:[%s115] ss:$8 sm:$0x3] %vm73, %v114
    %117 = vst.msk [vmem:[%s115] ss:$8 sm:$0x0] %vm73, %v114
    %s118 = sadd.s32 %s59, 3
    %s119 = sld [smem:[#allocation4 + %s118]]
    %s120 = sshra.s32 %s119, 3
    %s121 = sand.u32 %s119, 7
    %s122 = sshra.s32 %s119, 3
    %s123 = sand.u32 %s119, 7
    %s124 = smul.u32 %s120, 2
    %s125 = smul.u32 %s124, 8
    %s126 = sadd.s32 %s125, %s123
    %s127 = scalar_lea.vmem [#allocation5], %s126
    %v128 = vld [vmem:[%s127] ss:$8 sm:$0x3]
    %s129 = scalar_lea.vmem [#allocation11], 3
    %130 = vst.msk [vmem:[%s129] ss:$8 sm:$0x3] %vm73, %v128
    %131 = vst.msk [vmem:[%s129] ss:$8 sm:$0x0] %vm73, %v128
    %s132 = scalar_lea.vmem [#allocation8], %s126
    %v133 = vld [vmem:[%s132] ss:$8 sm:$0x3]
    %s134 = scalar_lea.vmem [#allocation2], 3
    %135 = vst.msk [vmem:[%s134] ss:$8 sm:$0x3] %vm73, %v133
    %136 = vst.msk [vmem:[%s134] ss:$8 sm:$0x0] %vm73, %v133
    %s137 = sadd.s32 %s59, 4
    %s138 = sld [smem:[#allocation4 + %s137]]
    %s139 = sshra.s32 %s138, 3
    %s140 = sand.u32 %s138, 7
    %s141 = sshra.s32 %s138, 3
    %s142 = sand.u32 %s138, 7
    %s143 = smul.u32 %s139, 2
    %s144 = smul.u32 %s143, 8
    %s145 = sadd.s32 %s144, %s142
    %s146 = scalar_lea.vmem [#allocation5], %s145
    %v147 = vld [vmem:[%s146] ss:$8 sm:$0x3]
    %s148 = scalar_lea.vmem [#allocation11], 4
    %149 = vst.msk [vmem:[%s148] ss:$8 sm:$0x3] %vm73, %v147
    %150 = vst.msk [vmem:[%s148] ss:$8 sm:$0x0] %vm73, %v147
    %s151 = scalar_lea.vmem [#allocation8], %s145
    %v152 = vld [vmem:[%s151] ss:$8 sm:$0x3]
    %s153 = scalar_lea.vmem [#allocation2], 4
    %154 = vst.msk [vmem:[%s153] ss:$8 sm:$0x3] %vm73, %v152
    %155 = vst.msk [vmem:[%s153] ss:$8 sm:$0x0] %vm73, %v152
    %s156 = sadd.s32 %s59, 5
    %s157 = sld [smem:[#allocation4 + %s156]]
    %s158 = sshra.s32 %s157, 3
    %s159 = sand.u32 %s157, 7
    %s160 = sshra.s32 %s157, 3
    %s161 = sand.u32 %s157, 7
    %s162 = smul.u32 %s158, 2
    %s163 = smul.u32 %s162, 8
    %s164 = sadd.s32 %s163, %s161
    %s165 = scalar_lea.vmem [#allocation5], %s164
    %v166 = vld [vmem:[%s165] ss:$8 sm:$0x3]
    %s167 = scalar_lea.vmem [#allocation11], 5
    %168 = vst.msk [vmem:[%s167] ss:$8 sm:$0x3] %vm73, %v166
    %169 = vst.msk [vmem:[%s167] ss:$8 sm:$0x0] %vm73, %v166
    %s170 = scalar_lea.vmem [#allocation8], %s164
    %v171 = vld [vmem:[%s170] ss:$8 sm:$0x3]
    %s172 = scalar_lea.vmem [#allocation2], 5
    %173 = vst.msk [vmem:[%s172] ss:$8 sm:$0x3] %vm73, %v171
    %174 = vst.msk [vmem:[%s172] ss:$8 sm:$0x0] %vm73, %v171
    %s175 = sadd.s32 %s59, 6
    %s176 = sld [smem:[#allocation4 + %s175]]
    %s177 = sshra.s32 %s176, 3
    %s178 = sand.u32 %s176, 7
    %s179 = sshra.s32 %s176, 3
    %s180 = sand.u32 %s176, 7
    %s181 = smul.u32 %s177, 2
    %s182 = smul.u32 %s181, 8
    %s183 = sadd.s32 %s182, %s180
    %s184 = scalar_lea.vmem [#allocation5], %s183
    %v185 = vld [vmem:[%s184] ss:$8 sm:$0x3]
    %s186 = scalar_lea.vmem [#allocation11], 6
    %187 = vst.msk [vmem:[%s186] ss:$8 sm:$0x3] %vm73, %v185
    %188 = vst.msk [vmem:[%s186] ss:$8 sm:$0x0] %vm73, %v185
    %s189 = scalar_lea.vmem [#allocation8], %s183
    %v190 = vld [vmem:[%s189] ss:$8 sm:$0x3]
    %s191 = scalar_lea.vmem [#allocation2], 6
    %192 = vst.msk [vmem:[%s191] ss:$8 sm:$0x3] %vm73, %v190
    %193 = vst.msk [vmem:[%s191] ss:$8 sm:$0x0] %vm73, %v190
    %s194 = sadd.s32 %s59, 7
    %s195 = sld [smem:[#allocation4 + %s194]]
    %s196 = sshra.s32 %s195, 3
    %s197 = sand.u32 %s195, 7
    %s198 = sshra.s32 %s195, 3
    %s199 = sand.u32 %s195, 7
    %s200 = smul.u32 %s196, 2
    %s201 = smul.u32 %s200, 8
    %s202 = sadd.s32 %s201, %s199
    %s203 = scalar_lea.vmem [#allocation5], %s202
    %v204 = vld [vmem:[%s203] ss:$8 sm:$0x3]
    %s205 = scalar_lea.vmem [#allocation11], 7
    %206 = vst.msk [vmem:[%s205] ss:$8 sm:$0x3] %vm73, %v204
    %207 = vst.msk [vmem:[%s205] ss:$8 sm:$0x0] %vm73, %v204
    %s208 = scalar_lea.vmem [#allocation8], %s202
    %v209 = vld [vmem:[%s208] ss:$8 sm:$0x3]
    %s210 = scalar_lea.vmem [#allocation2], 7
    %211 = vst.msk [vmem:[%s210] ss:$8 sm:$0x3] %vm73, %v209
    %212 = vst.msk [vmem:[%s210] ss:$8 sm:$0x0] %vm73, %v209
    %v213 = vld [vmem:[#allocation2] sm:$0xff]
    %v214 = vld [vmem:[#allocation2 + $0x8] sm:$0xff]
    %v215 = vmul.f32 %v213, 0.5
    %v216 = vmul.f32 %v214, 0.5
    %v217 = vmul.f32 %v215, 1.442695
    %v218 = vpow.pop %v217
    %v219 = vmul.f32 %v216, 1.442695
    %v220 = vpow.pop %v219
    %v221 = vld [vmem:[#allocation11] sm:$0xff]
    %v222 = vld [vmem:[#allocation11 + $0x8] sm:$0xff]
    %v223 = vld [vmem:[#allocation10] sm:$0xff]
    %v224 = vld [vmem:[#allocation10 + $0x8] sm:$0xff]
    %v225 = vmul.f32 %v218, %v223
    %v226 = vmul.f32 %v220, %v224
    %v227 = vadd.f32 %v221, %v225
    %v228 = vadd.f32 %v222, %v226
    %229 = vst [vmem:[#allocation11] sm:$0xff] %v227
    %230 = vst [vmem:[#allocation11 + $0x8] sm:$0xff] %v228
    // Predicated region
    $region26: #{tpu_custom_call.1} parent=1 // pred_check
      _
    $region27: #{tpu_custom_call.1} parent=1 // pred_check_branch
      %232 = sbr.rel (0) target = $region29
    $region28: #{tpu_custom_call.1} parent=1 // pred_region
      %s234 = ssub.s32 256, 256
      %235 = vsyncadd [#allocation7], %s234
      %s237 = sshll.u32 [#allocation11], 4
      %s238 = int_to_ptr.vmem [resolvable:$true] %s237
      %240 = dma.vmem_to_hbm [thread:$0]  %s238, 256, %s4, [#allocation7]
    $region29: #{tpu_custom_call.1} parent=1 // pred_fallthru
      _
    // Predicated region
    $region30: #{tpu_custom_call.1} parent=1 // pred_check
      _
    $region31: #{tpu_custom_call.1} parent=1 // pred_check_branch
      %242 = sbr.rel (0) target = $region33
    $region32: #{tpu_custom_call.1} parent=1 // pred_region
      %243 = dma.done [#allocation7], 256
    $region33: #{tpu_custom_call.1} parent=1 // pred_fallthru
      _
    %244 = vsyncpa [#allocation6], 1
    %245 = vsyncpa [#allocation9], 1
    %246 = vsyncpa [#allocation7], 1

</llo_original>
